<compile_context>
chip_gen: v7x
topology: tpu7x:2x2x1
jax: 0.10.0
libtpu: 0.0.40
codegen_flags: <defaults>
</compile_context>

<pallas_src>
import jax
import jax.numpy as jnp
from jax.experimental import pallas as pl
from jax.experimental.pallas import tpu as pltpu

IN_FEATURES = 48 * 14   # 672
HIDDEN = 100
HIDDEN_PAD = 128        # lane-aligned hidden width (zero-padded)
OUT = 1


def rev_grad(x, lam):
    """Gradient-reversal layer: identity forward, grad scaled by -lam backward."""
    @jax.custom_vjp
    def _rev(v):
        return v

    def _fwd(v):
        return v, None

    def _bwd(_, g):
        return ((-lam) * g,)

    _rev.defvjp(_fwd, _bwd)
    return _rev(x)


def domain_classifier_kernel(x_ref, w4_ref, b4_ref, w5_ref, b5_ref, o_ref):
    # Cast the activation tile to bf16 in VMEM (no extra HBM pass) and run
    # fc4 on the MXU with f32 accumulation.
    xb = x_ref[...].astype(jnp.bfloat16)
    h = jnp.dot(xb, w4_ref[...], preferred_element_type=jnp.float32)
    # Bias + ReLU in f32. Padded hidden lanes have b4 == 0 -> stay exactly 0.
    h = jnp.maximum(h + b4_ref[...], 0.0)                       # (TB, 128) f32
    # fc5 (hidden -> 1): VPU elementwise multiply + lane reduction (XLU).
    # Padded w5 lanes are 0 so they contribute nothing.
    o = jnp.sum(h * w5_ref[...], axis=-1, keepdims=True) + b5_ref[0, 0]
    o_ref[...] = o.astype(o_ref.dtype)


def _round_up(n, m):
    return ((n + m - 1) // m) * m


def _select_tile(B, tb_max):
    """Pick (TB, n_tiles) without padding the batch.

    Tiny batches run as a single full-array block (always layout-legal).
    Otherwise TB is a multiple of 8 (sublane alignment for the partial edge
    tile), capped at tb_max, and chosen so n_tiles >= 2 so the 'parallel'
    grid axis can be split across both v7x TensorCores."""
    if B <= 256:
        return B, 1
    tb = min(tb_max, max(8, _round_up(pl.cdiv(B, 2), 8)))
    return tb, pl.cdiv(B, tb)


def domain_classifier_forward(x, lam, params, tb=4096):
    """Forward pass of DomainClassifier.

    `lam` only affects the backward pass: gradient reversal is the identity in
    the forward pass and scales the gradient by -lam in the backward pass.
    """
    w4, b4, w5, b5 = params
    B = x.shape[0]
    assert x.shape[1] == IN_FEATURES, x.shape
    out_dtype = x.dtype

    # Gradient reversal: identity forward, -lam * grad backward.
    # TODO(synk): the Pallas forward has no VJP registered; a backward kernel is
    # still needed before jax.grad can flow through this head end-to-end.
    x = rev_grad(x, lam)

    # --- one-time, weight-sized prep: pad HIDDEN 100 -> 128, cast w4 to bf16 ---
    w4p = jnp.zeros((IN_FEATURES, HIDDEN_PAD), jnp.bfloat16)
    w4p = w4p.at[:, :HIDDEN].set(w4.astype(jnp.bfloat16))
    b4p = jnp.zeros((1, HIDDEN_PAD), jnp.float32)
    b4p = b4p.at[0, :HIDDEN].set(b4.astype(jnp.float32))
    w5p = jnp.zeros((1, HIDDEN_PAD), jnp.float32)
    w5p = w5p.at[0, :HIDDEN].set(w5.reshape(-1).astype(jnp.float32))
    b5s = jnp.asarray(b5, jnp.float32).reshape(1, 1)

    # x streams in its native dtype (pass bf16 upstream for 2 B/elem HBM
    # traffic); the bf16 cast for the MXU happens inside the kernel, so there
    # is no wrapper-side HBM pass over the activation.
    x_bytes = jnp.dtype(x.dtype).itemsize

    tb = max(8, 8 * (int(tb) // 8))
    TB, n_tiles = _select_tile(B, tb)

    # Explicit VMEM budget: big tiles exceed the scoped defaults
    # (16 MiB v5e, 32 MiB v6e/v7x); keep well below v7x's 64 MiB physical.
    vmem_bytes = (
        2 * TB * IN_FEATURES * x_bytes      # x tiles, double-buffered
        + 2 * TB * OUT * 4                  # output tiles, double-buffered
        + 2 * IN_FEATURES * HIDDEN_PAD * 2  # w4 (bf16) buffers
        + 4 * HIDDEN_PAD * 4 * 2            # b4 / w5 buffers
        + TB * IN_FEATURES * 2              # in-kernel bf16 cast of the x tile
        + TB * HIDDEN_PAD * 4               # f32 fc4 intermediate
    )
    vmem_limit = int(min(56 << 20, max(16 << 20, vmem_bytes + (8 << 20))))

    cost = pl.CostEstimate(
        flops=2 * B * IN_FEATURES * HIDDEN_PAD + 4 * B * HIDDEN_PAD,
        transcendentals=0,
        bytes_accessed=int(
            B * IN_FEATURES * x_bytes + IN_FEATURES * HIDDEN_PAD * 2 + B * OUT * 4
        ),
    )

    out = pl.pallas_call(
        domain_classifier_kernel,
        out_shape=jax.ShapeDtypeStruct((B, OUT), jnp.float32),
        grid=(n_tiles,),
        in_specs=[
            pl.BlockSpec((TB, IN_FEATURES), lambda i: (i, 0)),          # x tile (pipelined)
            pl.BlockSpec((IN_FEATURES, HIDDEN_PAD), lambda i: (0, 0)),   # w4 (resident)
            pl.BlockSpec((1, HIDDEN_PAD), lambda i: (0, 0)),             # b4 (resident)
            pl.BlockSpec((1, HIDDEN_PAD), lambda i: (0, 0)),             # w5 row (resident)
            pl.BlockSpec(memory_space=pltpu.MemorySpace.SMEM),           # b5 scalar
        ],
        out_specs=pl.BlockSpec((TB, OUT), lambda i: (i, 0)),
        compiler_params=pltpu.CompilerParams(
            dimension_semantics=("parallel",),
            vmem_limit_bytes=vmem_limit,
        ),
        cost_estimate=cost,
    )(x, w4p, b4p, w5p, b5s)

    return out.astype(out_dtype)


def init_params(key, dtype=jnp.float32):
    """Deterministic init matching PyTorch nn.Linear default (uniform +-1/sqrt(fan_in)).
    Weights stored pre-transposed as (in_features, out_features)."""
    k1, k2, k3, k4 = jax.random.split(key, 4)
    bound4 = 1.0 / (IN_FEATURES ** 0.5)
    bound5 = 1.0 / (HIDDEN ** 0.5)
    w4 = jax.random.uniform(k1, (IN_FEATURES, HIDDEN), dtype, -bound4, bound4)
    b4 = jax.random.uniform(k2, (HIDDEN,), dtype, -bound4, bound4)
    w5 = jax.random.uniform(k3, (HIDDEN, OUT), dtype, -bound5, bound5)
    b5 = jax.random.uniform(k4, (OUT,), dtype, -bound5, bound5)
    return (w4, b4, w5, b5)


if __name__ == "__main__":
    key = jax.random.PRNGKey(0)
    k_params, k_x = jax.random.split(key)
    params = init_params(k_params)
    w4, b4, w5, b5 = params

    def reference(xin):
        # Mirrors the kernel's numeric path: bf16 quantization of x and w4,
        # exact f32-accumulated matmul, f32 bias + ReLU, f32 fc5 reduction.
        xb = xin.astype(jnp.bfloat16).astype(jnp.float32)
        w4b = w4.astype(jnp.bfloat16).astype(jnp.float32)
        h = jnp.maximum(
            jnp.dot(xb, w4b, precision=jax.lax.Precision.HIGHEST) + b4, 0.0)
        return jnp.sum(h * w5.reshape(1, -1), axis=-1, keepdims=True) + b5

    lam = 0.5  # gradient-reversal coefficient; unused in forward

    # Single-tile path (tiny batch, full-array block).
    x = jax.random.normal(k_x, (8, IN_FEATURES), jnp.float32)
    out = jax.block_until_ready(domain_classifier_forward(x, lam, params))
    assert out.shape == (8, OUT), out.shape
    assert jnp.allclose(out, reference(x), atol=1e-3, rtol=1e-3), "mismatch vs reference"

    # Two-tile path with a partial edge block (no wrapper-side padding).
    x2 = jax.random.normal(jax.random.PRNGKey(1), (300, IN_FEATURES), jnp.float32)
    out2 = jax.block_until_ready(domain_classifier_forward(x2, lam, params))
    assert out2.shape == (300, OUT), out2.shape
    assert jnp.allclose(out2, reference(x2), atol=1e-3, rtol=1e-3), "mismatch vs reference"

    # Many tiles with a small forced tile (exercises pipelining + edge masking).
    x3 = jax.random.normal(jax.random.PRNGKey(2), (700, IN_FEATURES), jnp.float32)
    out3 = jax.block_until_ready(domain_classifier_forward(x3, lam, params, tb=128))
    assert out3.shape == (700, OUT), out3.shape
    assert jnp.allclose(out3, reference(x3), atol=1e-3, rtol=1e-3), "mismatch vs reference"

    print("KERNEL_OK")
</pallas_src>

<mosaic_0001>
module attributes {stable_mosaic.version = 11 : i64} {
  func.func @domain_classifier_kernel(%arg0: i32, %arg1: memref<8x672xf32, #tpu.memory_space<vmem>>, %arg2: memref<672x128xbf16, #tpu.memory_space<vmem>>, %arg3: memref<1x128xf32, #tpu.memory_space<vmem>>, %arg4: memref<1x128xf32, #tpu.memory_space<vmem>>, %arg5: memref<1x1xf32, #tpu.memory_space<smem>>, %arg6: memref<8x1xf32, #tpu.memory_space<vmem>>) attributes {dimension_semantics = [#tpu.dimension_semantics<parallel>], iteration_bounds = array<i64: 1>, scalar_prefetch = 0 : i64, scratch_operands = 0 : i64, tpu.core_type = #tpu.core_type<tc>, window_params = [{transform_indices = @transform_0, window_bounds = array<i64: 8, 672>}, {pipeline_mode = #tpu.pipeline_mode<synchronous>, transform_indices = @transform_1, window_bounds = array<i64: 672, 128>}, {pipeline_mode = #tpu.pipeline_mode<synchronous>, transform_indices = @transform_2, window_bounds = array<i64: 1, 128>}, {pipeline_mode = #tpu.pipeline_mode<synchronous>, transform_indices = @transform_3, window_bounds = array<i64: 1, 128>}, {transform_indices = @transform_4, window_bounds = array<i64: 1, 1>}, {transform_indices = @transform_5, window_bounds = array<i64: 8, 1>}]} {
    %c0 = arith.constant 0 : index
    %c0_0 = arith.constant 0 : index
    %0 = vector.load %arg1[%c0, %c0_0] : memref<8x672xf32, #tpu.memory_space<vmem>>, vector<8x672xf32>
    %1 = arith.truncf %0 : vector<8x672xf32> to vector<8x672xbf16>
    %c0_1 = arith.constant 0 : index
    %c0_2 = arith.constant 0 : index
    %2 = vector.load %arg2[%c0_1, %c0_2] : memref<672x128xbf16, #tpu.memory_space<vmem>>, vector<672x128xbf16>
    %cst = arith.constant dense<0.000000e+00> : vector<8x128xf32>
    %3 = tpu.matmul %1, %2, %cst {dimension_numbers = #tpu.dot_dimension_numbers<[1], [0], [0], [1], [0, 0, 1, 1], [], []>} : vector<8x672xbf16>, vector<672x128xbf16>, vector<8x128xf32> -> vector<8x128xf32>
    %c0_3 = arith.constant 0 : index
    %c0_4 = arith.constant 0 : index
    %4 = vector.load %arg3[%c0_3, %c0_4] : memref<1x128xf32, #tpu.memory_space<vmem>>, vector<1x128xf32>
    %5 = vector.broadcast %4 : vector<1x128xf32> to vector<8x128xf32>
    %6 = arith.addf %3, %5 : vector<8x128xf32>
    %cst_5 = arith.constant 0.000000e+00 : f32
    %7 = vector.broadcast %cst_5 : f32 to vector<8x128xf32>
    %8 = arith.maximumf %6, %7 : vector<8x128xf32>
    %c0_6 = arith.constant 0 : index
    %c0_7 = arith.constant 0 : index
    %9 = vector.load %arg4[%c0_6, %c0_7] : memref<1x128xf32, #tpu.memory_space<vmem>>, vector<1x128xf32>
    %10 = vector.broadcast %9 : vector<1x128xf32> to vector<8x128xf32>
    %11 = arith.mulf %8, %10 : vector<8x128xf32>
    %cst_8 = arith.constant dense<0.000000e+00> : vector<8xf32>
    %12 = vector.multi_reduction <add>, %11, %cst_8 [1] : vector<8x128xf32> to vector<8xf32>
    %13 = vector.shape_cast %12 : vector<8xf32> to vector<8x1xf32>
    %c0_9 = arith.constant 0 : index
    %c0_10 = arith.constant 0 : index
    %14 = memref.load %arg5[%c0_9, %c0_10] : memref<1x1xf32, #tpu.memory_space<smem>>
    %15 = vector.broadcast %14 : f32 to vector<8x1xf32>
    %16 = arith.addf %13, %15 : vector<8x1xf32>
    %c0_11 = arith.constant 0 : index
    %c0_12 = arith.constant 0 : index
    %17 = vector.load %arg6[%c0_11, %c0_12] : memref<8x1xf32, #tpu.memory_space<vmem>>, vector<8x1xf32>
    tpu.vector_store %arg6[%c0_11, %c0_12], %16 {strides = array<i32>} : memref<8x1xf32, #tpu.memory_space<vmem>>, vector<8x1xf32>,
    return
  }
  func.func @transform_0(%arg0: i32) -> (i32, i32) {
    %c0_i32 = arith.constant 0 : i32
    %c0_i32_0 = arith.constant 0 : i32
    return %arg0, %c0_i32 : i32, i32
  }
  func.func @transform_1(%arg0: i32) -> (i32, i32) {
    %c0_i32 = arith.constant 0 : i32
    %c0_i32_0 = arith.constant 0 : i32
    %c0_i32_1 = arith.constant 0 : i32
    return %c0_i32, %c0_i32_0 : i32, i32
  }
  func.func @transform_2(%arg0: i32) -> (i32, i32) {
    %c0_i32 = arith.constant 0 : i32
    %c0_i32_0 = arith.constant 0 : i32
    %c0_i32_1 = arith.constant 0 : i32
    return %c0_i32, %c0_i32_0 : i32, i32
  }
  func.func @transform_3(%arg0: i32) -> (i32, i32) {
    %c0_i32 = arith.constant 0 : i32
    %c0_i32_0 = arith.constant 0 : i32
    %c0_i32_1 = arith.constant 0 : i32
    return %c0_i32, %c0_i32_0 : i32, i32
  }
  func.func @transform_4(%arg0: i32) -> (i32, i32) {
    %c0_i32 = arith.constant 0 : i32
    %c0_i32_0 = arith.constant 0 : i32
    %c0_i32_1 = arith.constant 0 : i32
    return %c0_i32, %c0_i32_0 : i32, i32
  }
  func.func @transform_5(%arg0: i32) -> (i32, i32) {
    %c0_i32 = arith.constant 0 : i32
    %c0_i32_0 = arith.constant 0 : i32
    return %arg0, %c0_i32 : i32, i32
  }
}

</mosaic_0001>

<llo_original>
// kernel: tpu_custom_call.1
$region0: #{tpu_custom_call.1}
  #allocation0 [shape = 'u32[]', space=smem, size = 0x4, offset = 0x4, fixed_abs, tag = 'smem constant byte address 0x4 - core index']
  #allocation1 [shape = 'u32[144,128]{1,0:T(1,128)}', space=vmem, size = 0x12000, scoped, tag = 'internal scratch']
  #allocation2 [shape = 'f32[1,1]{1,0:T(1,128)S(6)}', space=smem, size = 0x200, scoped, tag = 'scoped memory for tpu_custom_call.1']
  %s0 = inlined_call_operand.hbm [shape: f32[8,672], index: 0, kind: input, shape index: {}]
  %s1 = inlined_call_operand.hbm [shape: bf16[672,128], index: 1, kind: input, shape index: {}]
  %s2 = inlined_call_operand.vmem [shape: f32[1,128], index: 2, kind: input, shape index: {}]
  %s3 = inlined_call_operand.vmem [shape: f32[1,128], index: 3, kind: input, shape index: {}]
  %s4 = inlined_call_operand.<no memory space> [shape: f32[1,1], index: 4, kind: input, shape index: {}]
  %s5 = inlined_call_operand.vmem [shape: f32[8,1], index: 5, kind: output, shape index: {}]
  %s6 = sld [smem:[#allocation0]]
  $region38: #{tpu_custom_call.1} parent=0
    _
  %s8 = ssub.s32 1, %s6
  %s9 = scalar_select 0, %s8, %s6
  %10 = sst [smem:[#allocation2]] %s4
  $region1: #{tpu_custom_call.1} parent=0
    #allocation3 [shape = 'u8[24576]{0}', space=vmem, size = 0x6000, scoped, tag = 'input window, operand 0, single buffered']
    #allocation4 [shape = 's32[1]{0}', space=sflag, size = 0x4, scoped, tag = 'scoped memory for tpu_custom_call.1']
    #allocation5 [shape = 'u8[172032]{0}', space=vmem, size = 0x2a000, scoped, tag = 'input window, operand 1, single buffered']
    #allocation6 [shape = 's32[1]{0}', space=sflag, size = 0x4, scoped, tag = 'scoped memory for tpu_custom_call.1']
    %11 = vsyncpa [#allocation4], 0
    %12 = vsyncpa [#allocation6], 0
    // Predicated region
    $region2: #{tpu_custom_call.1} parent=1 // pred_check
      _
    $region3: #{tpu_custom_call.1} parent=1 // pred_check_branch
      %14 = sbr.rel (0) target = $region5
    $region4: #{tpu_custom_call.1} parent=1 // pred_region
      %s16 = ssub.s32 768, 768
      %17 = vsyncadd [#allocation4], %s16
      %s19 = sshll.u32 [#allocation3], 4
      %s20 = int_to_ptr.vmem [resolvable:$true] %s19
      %22 = dma.hbm_to_vmem [thread:$0]  %s0, 768, %s20, [#allocation4]
    $region5: #{tpu_custom_call.1} parent=1 // pred_fallthru
      _
    // Predicated region
    $region6: #{tpu_custom_call.1} parent=1 // pred_check
      _
    $region7: #{tpu_custom_call.1} parent=1 // pred_check_branch
      %24 = sbr.rel (0) target = $region9
    $region8: #{tpu_custom_call.1} parent=1 // pred_region
      %s26 = ssub.s32 5376, 5376
      %27 = vsyncadd [#allocation6], %s26
      %s28 = sshll.u32 [#allocation5], 4
      %s29 = int_to_ptr.vmem [resolvable:$true] %s28
      %34 = dma.hbm_to_vmem [thread:$0]  %s1, 5376, %s29, [#allocation6], 64, 64, 4
    $region9: #{tpu_custom_call.1} parent=1 // pred_fallthru
      _
    // Predicated region
    $region10: #{tpu_custom_call.1} parent=1 // pred_check
      _
    $region11: #{tpu_custom_call.1} parent=1 // pred_check_branch
      %36 = sbr.rel (0) target = $region13
    $region12: #{tpu_custom_call.1} parent=1 // pred_region
      _
    $region13: #{tpu_custom_call.1} parent=1 // pred_fallthru
      _
    // Predicated region
    $region14: #{tpu_custom_call.1} parent=1 // pred_check
      _
    $region15: #{tpu_custom_call.1} parent=1 // pred_check_branch
      %38 = sbr.rel (0) target = $region17
    $region16: #{tpu_custom_call.1} parent=1 // pred_region
      _
    $region17: #{tpu_custom_call.1} parent=1 // pred_fallthru
      _
    // Predicated region
    $region18: #{tpu_custom_call.1} parent=1 // pred_check
      _
    $region19: #{tpu_custom_call.1} parent=1 // pred_check_branch
      %40 = sbr.rel (0) target = $region21
    $region20: #{tpu_custom_call.1} parent=1 // pred_region
      _
    $region21: #{tpu_custom_call.1} parent=1 // pred_fallthru
      _
    // Predicated region
    $region22: #{tpu_custom_call.1} parent=1 // pred_check
      _
    $region23: #{tpu_custom_call.1} parent=1 // pred_check_branch
      %42 = sbr.rel (0) target = $region25
    $region24: #{tpu_custom_call.1} parent=1 // pred_region
      %43 = dma.done [#allocation4], 768
    $region25: #{tpu_custom_call.1} parent=1 // pred_fallthru
      _
    // Predicated region
    $region26: #{tpu_custom_call.1} parent=1 // pred_check
      _
    $region27: #{tpu_custom_call.1} parent=1 // pred_check_branch
      %45 = sbr.rel (0) target = $region29
    $region28: #{tpu_custom_call.1} parent=1 // pred_region
      %46 = dma.done [#allocation6], 5376
    $region29: #{tpu_custom_call.1} parent=1 // pred_fallthru
      _
    %v48 = vld [vmem:[#allocation3] sm:$0xff]
    %v49 = vld [vmem:[#allocation3 + $0x8] sm:$0xff]
    %v50 = vld [vmem:[#allocation3 + $0x10] sm:$0xff]
    %v51 = vld [vmem:[#allocation3 + $0x18] sm:$0xff]
    %v52 = vld [vmem:[#allocation3 + $0x20] sm:$0xff]
    %v53 = vld [vmem:[#allocation3 + $0x28] sm:$0xff]
    %v54 = vpack.c.bf16 %v48, %v48
    %v55 = vpack.c.bf16 %v49, %v49
    %v56 = vpack.c.bf16 %v50, %v50
    %v57 = vpack.c.bf16 %v51, %v51
    %v58 = vpack.c.bf16 %v52, %v52
    %v59 = vpack.c.bf16 %v53, %v53
    %v60 = vld [vmem:[#allocation5] sm:$0xf]
    %v61 = vld [vmem:[#allocation5 + $0x4] sm:$0xf]
    %v62 = vld [vmem:[#allocation5 + $0x8] sm:$0xf]
    %v63 = vld [vmem:[#allocation5 + $0xc] sm:$0xf]
    %v64 = vld [vmem:[#allocation5 + $0x10] sm:$0xf]
    %v65 = vld [vmem:[#allocation5 + $0x14] sm:$0xf]
    %v66 = vld [vmem:[#allocation5 + $0x18] sm:$0xf]
    %v67 = vld [vmem:[#allocation5 + $0x1c] sm:$0xf]
    %v68 = vld [vmem:[#allocation5 + $0x20] sm:$0xf]
    %v69 = vld [vmem:[#allocation5 + $0x24] sm:$0xf]
    %v70 = vld [vmem:[#allocation5 + $0x28] sm:$0xf]
    %v71 = vld [vmem:[#allocation5 + $0x2c] sm:$0xf]
    %v72 = vld [vmem:[#allocation5 + $0x30] sm:$0xf]
    %v73 = vld [vmem:[#allocation5 + $0x34] sm:$0xf]
    %v74 = vld [vmem:[#allocation5 + $0x38] sm:$0xf]
    %v75 = vld [vmem:[#allocation5 + $0x3c] sm:$0xf]
    %v76 = vld [vmem:[#allocation5 + $0x40] sm:$0xf]
    %v77 = vld [vmem:[#allocation5 + $0x44] sm:$0xf]
    %v78 = vld [vmem:[#allocation5 + $0x48] sm:$0xf]
    %v79 = vld [vmem:[#allocation5 + $0x4c] sm:$0xf]
    %v80 = vld [vmem:[#allocation5 + $0x50] sm:$0xf]
    %v81 = vld [vmem:[#allocation5 + $0x54] sm:$0xf]
    %v82 = vld [vmem:[#allocation5 + $0x58] sm:$0xf]
    %v83 = vld [vmem:[#allocation5 + $0x5c] sm:$0xf]
    %v84 = vld [vmem:[#allocation5 + $0x60] sm:$0xf]
    %v85 = vld [vmem:[#allocation5 + $0x64] sm:$0xf]
    %v86 = vld [vmem:[#allocation5 + $0x68] sm:$0xf]
    %v87 = vld [vmem:[#allocation5 + $0x6c] sm:$0xf]
    %v88 = vld [vmem:[#allocation5 + $0x70] sm:$0xf]
    %v89 = vld [vmem:[#allocation5 + $0x74] sm:$0xf]
    %v90 = vld [vmem:[#allocation5 + $0x78] sm:$0xf]
    %v91 = vld [vmem:[#allocation5 + $0x7c] sm:$0xf]
    %v92 = vld [vmem:[#allocation5 + $0x80] sm:$0xf]
    %v93 = vld [vmem:[#allocation5 + $0x84] sm:$0xf]
    %v94 = vld [vmem:[#allocation5 + $0x88] sm:$0xf]
    %v95 = vld [vmem:[#allocation5 + $0x8c] sm:$0xf]
    %v96 = vld [vmem:[#allocation5 + $0x90] sm:$0xf]
    %v97 = vld [vmem:[#allocation5 + $0x94] sm:$0xf]
    %v98 = vld [vmem:[#allocation5 + $0x98] sm:$0xf]
    %v99 = vld [vmem:[#allocation5 + $0x9c] sm:$0xf]
    %v100 = vld [vmem:[#allocation5 + $0xa0] sm:$0xf]
    %v101 = vld [vmem:[#allocation5 + $0xa4] sm:$0xf]
    %v102 = vld [vmem:[#allocation5 + $0xa8] sm:$0xf]
    %v103 = vld [vmem:[#allocation5 + $0xac] sm:$0xf]
    %v104 = vld [vmem:[#allocation5 + $0xb0] sm:$0xf]
    %v105 = vld [vmem:[#allocation5 + $0xb4] sm:$0xf]
    %v106 = vld [vmem:[#allocation5 + $0xb8] sm:$0xf]
    %v107 = vld [vmem:[#allocation5 + $0xbc] sm:$0xf]
    %v108 = vld [vmem:[#allocation5 + $0xc0] sm:$0xf]
    %v109 = vld [vmem:[#allocation5 + $0xc4] sm:$0xf]
    %v110 = vld [vmem:[#allocation5 + $0xc8] sm:$0xf]
    %v111 = vld [vmem:[#allocation5 + $0xcc] sm:$0xf]
    %v112 = vld [vmem:[#allocation5 + $0xd0] sm:$0xf]
    %v113 = vld [vmem:[#allocation5 + $0xd4] sm:$0xf]
    %v114 = vld [vmem:[#allocation5 + $0xd8] sm:$0xf]
    %v115 = vld [vmem:[#allocation5 + $0xdc] sm:$0xf]
    %v116 = vld [vmem:[#allocation5 + $0xe0] sm:$0xf]
    %v117 = vld [vmem:[#allocation5 + $0xe4] sm:$0xf]
    %v118 = vld [vmem:[#allocation5 + $0xe8] sm:$0xf]
    %v119 = vld [vmem:[#allocation5 + $0xec] sm:$0xf]
    %v120 = vld [vmem:[#allocation5 + $0xf0] sm:$0xf]
    %v121 = vld [vmem:[#allocation5 + $0xf4] sm:$0xf]
    %v122 = vld [vmem:[#allocation5 + $0xf8] sm:$0xf]
    %v123 = vld [vmem:[#allocation5 + $0xfc] sm:$0xf]
    %v124 = vld [vmem:[#allocation5 + $0x100] sm:$0xf]
    %v125 = vld [vmem:[#allocation5 + $0x104] sm:$0xf]
    %v126 = vld [vmem:[#allocation5 + $0x108] sm:$0xf]
    %v127 = vld [vmem:[#allocation5 + $0x10c] sm:$0xf]
    %v128 = vld [vmem:[#allocation5 + $0x110] sm:$0xf]
    %v129 = vld [vmem:[#allocation5 + $0x114] sm:$0xf]
    %v130 = vld [vmem:[#allocation5 + $0x118] sm:$0xf]
    %v131 = vld [vmem:[#allocation5 + $0x11c] sm:$0xf]
    %v132 = vld [vmem:[#allocation5 + $0x120] sm:$0xf]
    %v133 = vld [vmem:[#allocation5 + $0x124] sm:$0xf]
    %v134 = vld [vmem:[#allocation5 + $0x128] sm:$0xf]
    %v135 = vld [vmem:[#allocation5 + $0x12c] sm:$0xf]
    %v136 = vld [vmem:[#allocation5 + $0x130] sm:$0xf]
    %v137 = vld [vmem:[#allocation5 + $0x134] sm:$0xf]
    %v138 = vld [vmem:[#allocation5 + $0x138] sm:$0xf]
    %v139 = vld [vmem:[#allocation5 + $0x13c] sm:$0xf]
    %v140 = vld [vmem:[#allocation5 + $0x140] sm:$0xf]
    %v141 = vld [vmem:[#allocation5 + $0x144] sm:$0xf]
    %v142 = vld [vmem:[#allocation5 + $0x148] sm:$0xf]
    %v143 = vld [vmem:[#allocation5 + $0x14c] sm:$0xf]
    %v144 = vld [vmem:[%s2] sm:$0x1]
    %v146 = vlaneseq
    %v147 = vshrl.u32 %v146, 7
    %v148 = vsub.s32 0, %v147
    %v149 = vrot.slane %v144, %v148
    %v235 = vunpack.c.l.b16 %v60
    %v236 = vunpack.c.l.b16 %v61
    %v237 = vunpack.c.l.b16 %v62
    %v238 = vunpack.c.l.b16 %v63
    %v239 = vunpack.c.l.b16 %v64
    %v240 = vunpack.c.l.b16 %v65
    %v241 = vunpack.c.l.b16 %v66
    %v242 = vunpack.c.l.b16 %v67
    %v243 = vunpack.c.l.b16 %v68
    %v244 = vunpack.c.l.b16 %v69
    %v245 = vunpack.c.l.b16 %v70
    %v246 = vunpack.c.l.b16 %v71
    %v247 = vunpack.c.l.b16 %v72
    %v248 = vunpack.c.l.b16 %v73
    %v249 = vunpack.c.l.b16 %v74
    %v250 = vunpack.c.l.b16 %v75
    %v251 = vunpack.c.l.b16 %v76
    %v252 = vunpack.c.l.b16 %v77
    %v253 = vunpack.c.l.b16 %v78
    %v254 = vunpack.c.l.b16 %v79
    %v255 = vunpack.c.l.b16 %v80
    %v256 = vunpack.c.l.b16 %v81
    %v257 = vunpack.c.l.b16 %v82
    %v258 = vunpack.c.l.b16 %v83
    %v259 = vunpack.c.l.b16 %v84
    %v260 = vunpack.c.l.b16 %v85
    %v261 = vunpack.c.l.b16 %v86
    %v262 = vunpack.c.l.b16 %v87
    %v263 = vunpack.c.l.b16 %v88
    %v264 = vunpack.c.l.b16 %v89
    %v265 = vunpack.c.l.b16 %v90
    %v266 = vunpack.c.l.b16 %v91
    %v267 = vunpack.c.l.b16 %v92
    %v268 = vunpack.c.l.b16 %v93
    %v269 = vunpack.c.l.b16 %v94
    %v270 = vunpack.c.l.b16 %v95
    %v271 = vunpack.c.l.b16 %v96
    %v272 = vunpack.c.l.b16 %v97
    %v273 = vunpack.c.l.b16 %v98
    %v274 = vunpack.c.l.b16 %v99
    %v275 = vunpack.c.l.b16 %v100
    %v276 = vunpack.c.l.b16 %v101
    %v277 = vunpack.c.l.b16 %v102
    %v278 = vunpack.c.l.b16 %v103
    %v279 = vunpack.c.l.b16 %v104
    %v280 = vunpack.c.l.b16 %v105
    %v281 = vunpack.c.l.b16 %v106
    %v282 = vunpack.c.l.b16 %v107
    %v283 = vunpack.c.l.b16 %v108
    %v284 = vunpack.c.l.b16 %v109
    %v285 = vunpack.c.l.b16 %v110
    %v286 = vunpack.c.l.b16 %v111
    %v287 = vunpack.c.l.b16 %v112
    %v288 = vunpack.c.l.b16 %v113
    %v289 = vunpack.c.l.b16 %v114
    %v290 = vunpack.c.l.b16 %v115
    %v291 = vunpack.c.l.b16 %v116
    %v292 = vunpack.c.l.b16 %v117
    %v293 = vunpack.c.l.b16 %v118
    %v294 = vunpack.c.l.b16 %v119
    %v295 = vunpack.c.l.b16 %v120
    %v296 = vunpack.c.l.b16 %v121
    %v297 = vunpack.c.l.b16 %v122
    %v298 = vunpack.c.l.b16 %v123
    %v299 = vunpack.c.l.b16 %v124
    %v300 = vunpack.c.l.b16 %v125
    %v301 = vunpack.c.l.b16 %v126
    %v302 = vunpack.c.l.b16 %v127
    %v303 = vunpack.c.l.b16 %v128
    %v304 = vunpack.c.l.b16 %v129
    %v305 = vunpack.c.l.b16 %v130
    %v306 = vunpack.c.l.b16 %v131
    %v307 = vunpack.c.l.b16 %v132
    %v308 = vunpack.c.l.b16 %v133
    %v309 = vunpack.c.l.b16 %v134
    %v310 = vunpack.c.l.b16 %v135
    %v311 = vunpack.c.l.b16 %v136
    %v312 = vunpack.c.l.b16 %v137
    %v313 = vunpack.c.l.b16 %v138
    %v314 = vunpack.c.l.b16 %v139
    %v315 = vunpack.c.l.b16 %v140
    %v316 = vunpack.c.l.b16 %v141
    %v317 = vunpack.c.l.b16 %v142
    %v318 = vunpack.c.l.b16 %v143
    %v319 = vpack.c.b16 %v236, %v235
    %v320 = vpack.c.b16 %v238, %v237
    %v321 = vpack.c.b16 %v240, %v239
    %v322 = vpack.c.b16 %v242, %v241
    %v323 = vpack.c.b16 %v244, %v243
    %v324 = vpack.c.b16 %v246, %v245
    %v325 = vpack.c.b16 %v248, %v247
    %v326 = vpack.c.b16 %v250, %v249
    %v327 = vpack.c.b16 %v252, %v251
    %v328 = vpack.c.b16 %v254, %v253
    %v329 = vpack.c.b16 %v256, %v255
    %v330 = vpack.c.b16 %v258, %v257
    %v331 = vpack.c.b16 %v260, %v259
    %v332 = vpack.c.b16 %v262, %v261
    %v333 = vpack.c.b16 %v264, %v263
    %v334 = vpack.c.b16 %v266, %v265
    %v335 = vpack.c.b16 %v268, %v267
    %v336 = vpack.c.b16 %v270, %v269
    %v337 = vpack.c.b16 %v272, %v271
    %v338 = vpack.c.b16 %v274, %v273
    %v339 = vpack.c.b16 %v276, %v275
    %v340 = vpack.c.b16 %v278, %v277
    %v341 = vpack.c.b16 %v280, %v279
    %v342 = vpack.c.b16 %v282, %v281
    %v343 = vpack.c.b16 %v284, %v283
    %v344 = vpack.c.b16 %v286, %v285
    %v345 = vpack.c.b16 %v288, %v287
    %v346 = vpack.c.b16 %v290, %v289
    %v347 = vpack.c.b16 %v292, %v291
    %v348 = vpack.c.b16 %v294, %v293
    %v349 = vpack.c.b16 %v296, %v295
    %v350 = vpack.c.b16 %v298, %v297
    %v351 = vpack.c.b16 %v300, %v299
    %v352 = vpack.c.b16 %v302, %v301
    %v353 = vpack.c.b16 %v304, %v303
    %v354 = vpack.c.b16 %v306, %v305
    %v355 = vpack.c.b16 %v308, %v307
    %v356 = vpack.c.b16 %v310, %v309
    %v357 = vpack.c.b16 %v312, %v311
    %v358 = vpack.c.b16 %v314, %v313
    %v359 = vpack.c.b16 %v316, %v315
    %v360 = vpack.c.b16 %v318, %v317
    %vm403 = vcmask 261120
    %v405 = vsel %vm403, %v59, 0
    %407 = vmatprep.subr.bf16.mxu0 0
    %408 = vmatpush1.bf16.msra.mxu0 %v319
    %409 = vmatprep.subr.bf16.mxu0 0
    %410 = vmatpush1.bf16.msra.mxu0 %v320
    %411 = vmatprep.subr.bf16.mxu0 0
    %412 = vmatpush1.bf16.msra.mxu0 %v321
    %413 = vmatprep.subr.bf16.mxu0 0
    %414 = vmatpush1.bf16.msra.mxu0 %v322
    %415 = vmatprep.subr.bf16.mxu0 0
    %416 = vmatpush1.bf16.msra.mxu0 %v323
    %417 = vmatprep.subr.bf16.mxu0 0
    %418 = vmatpush1.bf16.msra.mxu0 %v324
    %419 = vmatprep.subr.bf16.mxu0 0
    %420 = vmatpush1.bf16.msra.mxu0 %v325
    %421 = vmatprep.subr.bf16.mxu0 0
    %422 = vmatpush1.bf16.msra.mxu0 %v326
    %423 = vmatprep.subr.bf16.mxu0 0
    %424 = vmatpush1.bf16.msra.mxu0 %v327
    %425 = vmatprep.subr.bf16.mxu0 0
    %426 = vmatpush1.bf16.msra.mxu0 %v328
    %427 = vmatprep.subr.bf16.mxu0 0
    %428 = vmatpush1.bf16.msra.mxu0 %v329
    %429 = vmatprep.subr.bf16.mxu0 0
    %430 = vmatpush1.bf16.msra.mxu0 %v330
    %431 = vmatprep.subr.bf16.mxu0 0
    %432 = vmatpush1.bf16.msra.mxu0 %v331
    %433 = vmatprep.subr.bf16.mxu0 0
    %434 = vmatpush1.bf16.msra.mxu0 %v332
    %435 = vmatprep.subr.bf16.mxu0 0
    %436 = vmatpush1.bf16.msra.mxu0 %v333
    %437 = vmatprep.subr.bf16.mxu0 0
    %438 = vmatpush1.bf16.msra.mxu0 %v334
    %439 = vmatprep.mubr.bf16.mxu0 %v55
    %440 = vmatmul.mubr.bf16.gmra.mrb[0].mxu0 %v54
    %v441 = vpop.f32.mrb[0].mxu0
    %v442 = vadd.f32 %v149, %v441
    %v443 = vpop.f32.mrb[0].mxu0
    %v444 = vpop.f32.mrb[0].mxu0
    %v445 = vpop.f32.mrb[0].mxu0
    %446 = vdwg.mxu0
    %447 = vmatprep.subr.bf16.mxu0 0
    %448 = vmatpush1.bf16.msra.mxu0 %v335
    %449 = vmatprep.subr.bf16.mxu0 0
    %450 = vmatpush1.bf16.msra.mxu0 %v336
    %451 = vmatprep.subr.bf16.mxu0 0
    %452 = vmatpush1.bf16.msra.mxu0 %v337
    %453 = vmatprep.subr.bf16.mxu0 0
    %454 = vmatpush1.bf16.msra.mxu0 %v338
    %455 = vmatprep.subr.bf16.mxu0 0
    %456 = vmatpush1.bf16.msra.mxu0 %v339
    %457 = vmatprep.subr.bf16.mxu0 0
    %458 = vmatpush1.bf16.msra.mxu0 %v340
    %459 = vmatprep.subr.bf16.mxu0 0
    %460 = vmatpush1.bf16.msra.mxu0 %v341
    %461 = vmatprep.subr.bf16.mxu0 0
    %462 = vmatpush1.bf16.msra.mxu0 %v342
    %463 = vmatprep.subr.bf16.mxu0 0
    %464 = vmatpush1.bf16.msra.mxu0 %v343
    %465 = vmatprep.subr.bf16.mxu0 0
    %466 = vmatpush1.bf16.msra.mxu0 %v344
    %467 = vmatprep.subr.bf16.mxu0 0
    %468 = vmatpush1.bf16.msra.mxu0 %v345
    %469 = vmatprep.subr.bf16.mxu0 0
    %470 = vmatpush1.bf16.msra.mxu0 %v346
    %471 = vmatprep.subr.bf16.mxu0 0
    %472 = vmatpush1.bf16.msra.mxu0 %v347
    %473 = vmatprep.subr.bf16.mxu0 0
    %474 = vmatpush1.bf16.msra.mxu0 %v348
    %475 = vmatprep.subr.bf16.mxu0 0
    %476 = vmatpush1.bf16.msra.mxu0 %v349
    %477 = vmatprep.subr.bf16.mxu0 0
    %478 = vmatpush1.bf16.msra.mxu0 %v350
    %479 = vmatprep.mubr.bf16.mxu0 %v57
    %480 = vmatmul.mubr.bf16.gmra.mrb[0].mxu0 %v56
    %v481 = vpop.f32.mrb[0].mxu0
    %v482 = vadd.f32 %v442, %v481
    %v483 = vpop.f32.mrb[0].mxu0
    %v484 = vpop.f32.mrb[0].mxu0
    %v485 = vpop.f32.mrb[0].mxu0
    %486 = vdwg.mxu0
    %487 = vmatprep.subr.bf16.mxu0 0
    %488 = vmatpush1.bf16.msra.mxu0 %v351
    %489 = vmatprep.subr.bf16.mxu0 0
    %490 = vmatpush1.bf16.msra.mxu0 %v352
    %491 = vmatprep.subr.bf16.mxu0 0
    %492 = vmatpush1.bf16.msra.mxu0 %v353
    %493 = vmatprep.subr.bf16.mxu0 0
    %494 = vmatpush1.bf16.msra.mxu0 %v354
    %495 = vmatprep.subr.bf16.mxu0 0
    %496 = vmatpush1.bf16.msra.mxu0 %v355
    %497 = vmatprep.subr.bf16.mxu0 0
    %498 = vmatpush1.bf16.msra.mxu0 %v356
    %499 = vmatprep.subr.bf16.mxu0 0
    %500 = vmatpush1.bf16.msra.mxu0 %v357
    %501 = vmatprep.subr.bf16.mxu0 0
    %502 = vmatpush1.bf16.msra.mxu0 %v358
    %503 = vmatprep.subr.bf16.mxu0 0
    %504 = vmatpush1.bf16.msra.mxu0 %v359
    %505 = vmatprep.subr.bf16.mxu0 0
    %506 = vmatpush1.bf16.msra.mxu0 %v360
    %507 = vmatprep.subr.bf16.mxu0 0
    %508 = vmatpush1.bf16.msra.mxu0 0
    %509 = vmatprep.subr.bf16.mxu0 0
    %510 = vmatpush1.bf16.msra.mxu0 0
    %511 = vmatprep.subr.bf16.mxu0 0
    %512 = vmatpush1.bf16.msra.mxu0 0
    %513 = vmatprep.subr.bf16.mxu0 0
    %514 = vmatpush1.bf16.msra.mxu0 0
    %515 = vmatprep.subr.bf16.mxu0 0
    %516 = vmatpush1.bf16.msra.mxu0 0
    %517 = vmatprep.subr.bf16.mxu0 0
    %518 = vmatpush1.bf16.msra.mxu0 0
    %519 = vmatprep.mubr.bf16.mxu0 %v405
    %520 = vmatmul.mubr.bf16.gmra.mrb[0].mxu0 %v58
    %v521 = vpop.f32.mrb[0].mxu0
    %v522 = vadd.f32 %v482, %v521
    %v523 = vpop.f32.mrb[0].mxu0
    %v524 = vpop.f32.mrb[0].mxu0
    %v525 = vpop.f32.mrb[0].mxu0
    %526 = vdwg.mxu0
    %v527 = vmax.f32 %v522, 0.0
    %v528 = vld [vmem:[%s3] sm:$0x1]
    %v530 = vlaneseq
    %v531 = vshrl.u32 %v530, 7
    %v532 = vsub.s32 0, %v531
    %v533 = vrot.slane %v528, %v532
    %v535 = vmul.f32 %v527, %v533
    %536 = vadd.xlane.f32.xlu0 %v535
    %v537 = vpop.xlane.xlu0 %536
    %s538 = sld [smem:[#allocation2]]
    %v539 = vstv %s538
    %v540 = vadd.f32 %v537, %v539
    %vm541 = vcmask 7168
    %542 = vst.msk [vmem:[%s5] sm:$0xff] %vm541, %v540
    // Predicated region
    $region30: #{tpu_custom_call.1} parent=1 // pred_check
      _
    $region31: #{tpu_custom_call.1} parent=1 // pred_check_branch
      %544 = sbr.rel (0) target = $region33
    $region32: #{tpu_custom_call.1} parent=1 // pred_region
      _
    $region33: #{tpu_custom_call.1} parent=1 // pred_fallthru
      _
    // Predicated region
    $region34: #{tpu_custom_call.1} parent=1 // pred_check
      _
    $region35: #{tpu_custom_call.1} parent=1 // pred_check_branch
      %546 = sbr.rel (0) target = $region37
    $region36: #{tpu_custom_call.1} parent=1 // pred_region
      _
    $region37: #{tpu_custom_call.1} parent=1 // pred_fallthru
      _
    %547 = vsyncpa [#allocation4], 1
    %548 = vsyncpa [#allocation6], 1

</llo_original>
